<compile_context>
chip_gen: v5e
topology: v5e:2x2
jax: 0.10.0
libtpu: 0.0.40
codegen_flags: <defaults>
</compile_context>

<pallas_src>
import jax
import jax.numpy as jnp
import numpy as np
from jax import lax
from jax.experimental import pallas as pl
from jax.experimental.pallas import tpu as pltpu

LEAKY_SLOPE = 0.01      # torch.nn.LeakyReLU default negative_slope
EPSILON = 1e-7          # stanza coref utils.add_dummy(eps=True)


def _round_up(x: int, m: int) -> int:
    return (x + m - 1) // m * m


def _anaphoricity_kernel(ment_ref, bpw_ref, bias_ref, rough_ref,
                         wbpw_ref, wsim_ref, wout_ref, startw_ref,
                         scores_ref, start_ref):
    Bt, A, MP = bpw_ref.shape          # (Bt, A, M+P) streamed pair features [top | pw]
    M, H = wsim_ref.shape

    bpw3 = bpw_ref[...]                                    # (Bt, A, M+P)
    # sim = anaphor * antecedent; anaphor broadcast from a single (Bt, M) row.
    sim3 = ment_ref[...][:, None, :] * bpw3[:, :, :M]      # (Bt, A, M)

    bpw2 = bpw3.reshape(Bt * A, MP)
    sim2 = sim3.reshape(Bt * A, M)

    # Hidden layer: two matmuls over all Bt*A pair rows, f32 accumulation.
    # (Anaphor columns of W1 were folded into the streamed per-row bias.)
    h2 = jnp.dot(bpw2, wbpw_ref[...], preferred_element_type=jnp.float32)
    h2 = h2 + jnp.dot(sim2, wsim_ref[...], preferred_element_type=jnp.float32)
    h3 = h2.reshape(Bt, A, H) + bias_ref[...][:, None, :]  # + per-batch-row bias
    h3 = jnp.where(h3 >= 0, h3, LEAKY_SLOPE * h3)          # LeakyReLU; Dropout = identity

    # Output Linear (H -> 1), NT contraction so scores come out lane-dense.
    x_row = lax.dot_general(wout_ref[...], h3.reshape(Bt * A, H),
                            (((1,), (1,)), ((), ())),
                            preferred_element_type=jnp.float32)      # (1, Bt*A)
    scores_ref[0] = x_row + rough_ref[0]                   # single dense store (rough+bout folded)

    # Singleton "start" score: start[b] = sum_a startw[a] * x[b, a]
    #   = (sum_a startw[a] * h[b, a, :]) @ Wout   (+ bout*sum(startw), added in wrapper)
    wh = jnp.sum(h3 * startw_ref[...], axis=1)             # (Bt, H) sublane-weighted reduce
    start_ref[0] = lax.dot_general(wout_ref[...], wh,
                                   (((1,), (1,)), ((), ())),
                                   preferred_element_type=jnp.float32)   # (1, Bt)


def anaphoricity_scorer_forward(params, *, top_mentions, mentions_batch,
                                pw_batch, top_rough_scores_batch,
                                input_dtype=jnp.float32, bt=64):
    W1, b1, Wout, bout, start_w = (params["W1"], params["b1"], params["Wout"],
                                   params["bout"], params["start_w"])
    B, A, M = top_mentions.shape
    P = pw_batch.shape[-1]
    H = W1.shape[0]
    assert A <= start_w.shape[1], "n_ants must not exceed rough_k for start_map slice"

    # Batch tile: multiple of 8 (sublane), padded grid.
    bt = min(bt, _round_up(B, 8))
    bt = _round_up(bt, 8)
    B_pad = _round_up(B, bt)
    T = B_pad // bt

    def pad_rows(x):
        pad = B_pad - x.shape[0]
        if pad:
            x = jnp.pad(x, ((0, pad),) + ((0, 0),) * (x.ndim - 1))
        return x

    # ---- Weight prep (torch Linear is [out, in]) -------------------------------
    WaT = W1[:, :M].T.astype(jnp.float32)                              # (M, H) anaphor cols
    WsimT = W1[:, 2 * M:3 * M].T.astype(input_dtype)                   # (M, H) similarity cols
    WbpwT = jnp.concatenate([W1[:, M:2 * M], W1[:, 3 * M:]],
                            axis=1).T.astype(input_dtype)              # (M+P, H) [top | pw] cols
    wout_row = Wout.reshape(1, H).astype(jnp.float32)
    startw_A = start_w[:, :A].astype(jnp.float32)                      # (1, A)
    startw3 = startw_A.reshape(1, A, 1)                                # broadcast over (Bt, A, H)
    bout_f = bout.astype(jnp.float32)                                  # (1,)

    # ---- Hoisted per-batch-row bias: one [B,M]x[M,H] matmul in XLA -------------
    bias = mentions_batch.astype(jnp.float32) @ WaT + b1.reshape(1, H).astype(jnp.float32)

    # ---- Streamed inputs (no anaphor replication; [top|pw] pre-concat) ---------
    ment2 = pad_rows(mentions_batch.astype(input_dtype))               # (B_pad, M)
    bpw3 = pad_rows(jnp.concatenate([top_mentions, pw_batch],
                                    axis=2).astype(input_dtype))       # (B_pad, A, M+P)
    bias2 = pad_rows(bias.astype(jnp.float32))                         # (B_pad, H)
    rough_plus = top_rough_scores_batch.astype(jnp.float32) + bout_f   # fold out-bias
    rough3 = pad_rows(rough_plus).reshape(T, 1, bt * A)                # lane-dense slab

    # ---- VMEM budget from the real per-step footprint (double buffered) --------
    isz = jnp.dtype(input_dtype).itemsize
    streamed = (bt * M * isz + bt * A * (M + P) * isz + bt * H * 4
                + bt * A * 4 + bt * A * 4 + bt * 4)
    resident = (M + P) * H * isz + M * H * isz + H * 4 + A * 4
    vmem_limit = int(min(64 * 2**20, max(16 * 2**20, 4 * (2 * streamed + resident))))

    const2 = lambda t: (0, 0)
    const3 = lambda t: (0, 0, 0)
    grid_spec = pltpu.PrefetchScalarGridSpec(
        num_scalar_prefetch=0,
        grid=(T,),
        in_specs=[
            pl.BlockSpec((bt, M), lambda t: (t, 0)),            # anaphor mentions
            pl.BlockSpec((bt, A, M + P), lambda t: (t, 0, 0)),  # [top | pw] pair features
            pl.BlockSpec((bt, H), lambda t: (t, 0)),            # per-row hidden bias
            pl.BlockSpec((1, 1, bt * A), lambda t: (t, 0, 0)),  # rough scores (+bout), lane-dense
            pl.BlockSpec((M + P, H), const2),                   # W_bpw   (resident)
            pl.BlockSpec((M, H), const2),                       # W_sim   (resident)
            pl.BlockSpec((1, H), const2),                       # Wout    (resident)
            pl.BlockSpec((1, A, 1), const3),                    # start_w (resident)
        ],
        out_specs=[
            pl.BlockSpec((1, 1, bt * A), lambda t: (t, 0, 0)),  # scores, lane-dense
            pl.BlockSpec((1, 1, bt), lambda t: (t, 0, 0)),      # start
        ],
    )

    scores_out, start_out = pl.pallas_call(
        _anaphoricity_kernel,
        out_shape=(jax.ShapeDtypeStruct((T, 1, bt * A), jnp.float32),
                   jax.ShapeDtypeStruct((T, 1, bt), jnp.float32)),
        grid_spec=grid_spec,
        compiler_params=pltpu.CompilerParams(
            dimension_semantics=("parallel",),      # megacore-shard batch tiles on v7x
            vmem_limit_bytes=vmem_limit),
    )(ment2, bpw3, bias2, rough3, WbpwT, WsimT, wout_row, startw3)

    # ---- XLA epilogue: unpad, add start constant, [start | eps | scores] -------
    scores = scores_out.reshape(B_pad, A)[:B]
    start = start_out.reshape(B_pad, 1)[:B] + bout_f[0] * jnp.sum(startw_A)
    eps_col = jnp.full((B, 1), EPSILON, dtype=jnp.float32)
    # TODO(synk): predict_singletons=False branch (no start column) not exercised here.
    return jnp.concatenate([start, eps_col, scores], axis=1)           # (B, A + 2)


def reference_forward(params, *, top_mentions, mentions_batch,
                      pw_batch, top_rough_scores_batch):
    """Pure-JAX replica of the PyTorch module (eval mode, singletons=True)."""
    W1, b1, Wout, bout, start_w = (params["W1"], params["b1"], params["Wout"],
                                   params["bout"], params["start_w"])
    B, A, M = top_mentions.shape
    a = jnp.broadcast_to(mentions_batch[:, None, :], top_mentions.shape)
    sim = a * top_mentions
    pair = jnp.concatenate([a, top_mentions, sim, pw_batch], axis=2)
    h = pair @ W1.T + b1
    h = jnp.where(h >= 0, h, LEAKY_SLOPE * h)
    x = (h @ Wout.T + bout)[..., 0]                    # (B, A)
    start = x @ start_w[:, :A].T                       # (B, 1)
    scores = x + top_rough_scores_batch
    eps_col = jnp.full((B, 1), EPSILON, dtype=scores.dtype)
    return jnp.concatenate([start, eps_col, scores], axis=1)


if __name__ == "__main__":
    B, A, M, P, H, ROUGH_K = 64, 8, 32, 16, 32, 16
    F = 3 * M + P     # in_features = pair_emb

    key = jax.random.PRNGKey(0)
    ks = jax.random.split(key, 9)
    params = dict(
        W1=0.05 * jax.random.normal(ks[0], (H, F), jnp.float32),
        b1=0.05 * jax.random.normal(ks[1], (H,), jnp.float32),
        Wout=0.05 * jax.random.normal(ks[2], (1, H), jnp.float32),
        bout=0.05 * jax.random.normal(ks[3], (1,), jnp.float32),
        start_w=0.05 * jax.random.normal(ks[4], (1, ROUGH_K), jnp.float32),
    )
    mentions_batch = jax.random.normal(ks[5], (B, M), jnp.float32)
    top_mentions = jax.random.normal(ks[6], (B, A, M), jnp.float32)
    pw_batch = jax.random.normal(ks[7], (B, A, P), jnp.float32)
    top_rough = jax.random.normal(ks[8], (B, A), jnp.float32)

    ref = reference_forward(
        params, top_mentions=top_mentions, mentions_batch=mentions_batch,
        pw_batch=pw_batch, top_rough_scores_batch=top_rough)

    # f32 path (exact): Bt=16 -> grid of 4 steps, 128 pair rows / 128-lane stores per step.
    out = anaphoricity_scorer_forward(
        params, top_mentions=top_mentions, mentions_batch=mentions_batch,
        pw_batch=pw_batch, top_rough_scores_batch=top_rough,
        input_dtype=jnp.float32, bt=16)
    out = jax.block_until_ready(out)
    assert out.shape == (B, A + 2), out.shape
    np.testing.assert_allclose(np.asarray(out), np.asarray(ref), rtol=1e-4, atol=1e-4)

    # bf16-input path (halves streamed HBM bytes on v6e/v7x); looser tolerance by design.
    out_bf16 = anaphoricity_scorer_forward(
        params, top_mentions=top_mentions, mentions_batch=mentions_batch,
        pw_batch=pw_batch, top_rough_scores_batch=top_rough,
        input_dtype=jnp.bfloat16, bt=16)
    out_bf16 = jax.block_until_ready(out_bf16)
    np.testing.assert_allclose(np.asarray(out_bf16), np.asarray(ref), rtol=5e-2, atol=5e-2)

    print("KERNEL_OK")
</pallas_src>

<mosaic_0001>
module attributes {stable_mosaic.version = 11 : i64} {
  func.func @_anaphoricity_kernel(%arg0: i32, %arg1: memref<16x32xf32, #tpu.memory_space<vmem>>, %arg2: memref<16x8x48xf32, #tpu.memory_space<vmem>>, %arg3: memref<16x32xf32, #tpu.memory_space<vmem>>, %arg4: memref<1x1x128xf32, #tpu.memory_space<vmem>>, %arg5: memref<48x32xf32, #tpu.memory_space<vmem>>, %arg6: memref<32x32xf32, #tpu.memory_space<vmem>>, %arg7: memref<1x32xf32, #tpu.memory_space<vmem>>, %arg8: memref<1x8x1xf32, #tpu.memory_space<vmem>>, %arg9: memref<1x1x128xf32, #tpu.memory_space<vmem>>, %arg10: memref<1x1x16xf32, #tpu.memory_space<vmem>>) attributes {dimension_semantics = [#tpu.dimension_semantics<parallel>], iteration_bounds = array<i64: 4>, scalar_prefetch = 0 : i64, scratch_operands = 0 : i64, tpu.core_type = #tpu.core_type<tc>, window_params = [{transform_indices = @transform_0, window_bounds = array<i64: 16, 32>}, {transform_indices = @transform_1, window_bounds = array<i64: 16, 8, 48>}, {transform_indices = @transform_2, window_bounds = array<i64: 16, 32>}, {transform_indices = @transform_3, window_bounds = array<i64: 1, 1, 128>}, {pipeline_mode = #tpu.pipeline_mode<synchronous>, transform_indices = @transform_4, window_bounds = array<i64: 48, 32>}, {pipeline_mode = #tpu.pipeline_mode<synchronous>, transform_indices = @transform_5, window_bounds = array<i64: 32, 32>}, {pipeline_mode = #tpu.pipeline_mode<synchronous>, transform_indices = @transform_6, window_bounds = array<i64: 1, 32>}, {pipeline_mode = #tpu.pipeline_mode<synchronous>, transform_indices = @transform_7, window_bounds = array<i64: 1, 8, 1>}, {transform_indices = @transform_8, window_bounds = array<i64: 1, 1, 128>}, {transform_indices = @transform_9, window_bounds = array<i64: 1, 1, 16>}]} {
    %c0 = arith.constant 0 : index
    %c0_0 = arith.constant 0 : index
    %c0_1 = arith.constant 0 : index
    %0 = vector.load %arg2[%c0, %c0_0, %c0_1] : memref<16x8x48xf32, #tpu.memory_space<vmem>>, vector<16x8x48xf32>
    %c0_2 = arith.constant 0 : index
    %c0_3 = arith.constant 0 : index
    %1 = vector.load %arg1[%c0_2, %c0_3] : memref<16x32xf32, #tpu.memory_space<vmem>>, vector<16x32xf32>
    %2 = vector.shape_cast %1 : vector<16x32xf32> to vector<16x1x32xf32>
    %3 = vector.extract_strided_slice %0 {offsets = [0, 0, 0], sizes = [16, 8, 32], strides = [1, 1, 1]} : vector<16x8x48xf32> to vector<16x8x32xf32>
    %4 = vector.broadcast %2 : vector<16x1x32xf32> to vector<16x8x32xf32>
    %5 = arith.mulf %4, %3 : vector<16x8x32xf32>
    %6 = vector.shape_cast %0 : vector<16x8x48xf32> to vector<128x48xf32>
    %7 = vector.shape_cast %5 : vector<16x8x32xf32> to vector<128x32xf32>
    %c0_4 = arith.constant 0 : index
    %c0_5 = arith.constant 0 : index
    %8 = vector.load %arg5[%c0_4, %c0_5] : memref<48x32xf32, #tpu.memory_space<vmem>>, vector<48x32xf32>
    %cst = arith.constant dense<0.000000e+00> : vector<128x32xf32>
    %9 = tpu.matmul %6, %8, %cst {dimension_numbers = #tpu.dot_dimension_numbers<[1], [0], [0], [1], [0, 0, 1, 1], [], []>} : vector<128x48xf32>, vector<48x32xf32>, vector<128x32xf32> -> vector<128x32xf32>
    %c0_6 = arith.constant 0 : index
    %c0_7 = arith.constant 0 : index
    %10 = vector.load %arg6[%c0_6, %c0_7] : memref<32x32xf32, #tpu.memory_space<vmem>>, vector<32x32xf32>
    %cst_8 = arith.constant dense<0.000000e+00> : vector<128x32xf32>
    %11 = tpu.matmul %7, %10, %cst_8 {dimension_numbers = #tpu.dot_dimension_numbers<[1], [0], [0], [1], [0, 0, 1, 1], [], []>} : vector<128x32xf32>, vector<32x32xf32>, vector<128x32xf32> -> vector<128x32xf32>
    %12 = arith.addf %9, %11 : vector<128x32xf32>
    %13 = vector.shape_cast %12 : vector<128x32xf32> to vector<16x8x32xf32>
    %c0_9 = arith.constant 0 : index
    %c0_10 = arith.constant 0 : index
    %14 = vector.load %arg3[%c0_9, %c0_10] : memref<16x32xf32, #tpu.memory_space<vmem>>, vector<16x32xf32>
    %15 = vector.shape_cast %14 : vector<16x32xf32> to vector<16x1x32xf32>
    %16 = vector.broadcast %15 : vector<16x1x32xf32> to vector<16x8x32xf32>
    %17 = arith.addf %13, %16 : vector<16x8x32xf32>
    %cst_11 = arith.constant 0.000000e+00 : f32
    %18 = vector.broadcast %cst_11 : f32 to vector<16x8x32xf32>
    %19 = arith.cmpf oge, %17, %18 : vector<16x8x32xf32>
    %cst_12 = arith.constant 0.00999999977 : f32
    %20 = vector.broadcast %cst_12 : f32 to vector<16x8x32xf32>
    %21 = arith.mulf %20, %17 : vector<16x8x32xf32>
    %22 = arith.select %19, %17, %21 : vector<16x8x32xi1>, vector<16x8x32xf32>
    %c0_13 = arith.constant 0 : index
    %c0_14 = arith.constant 0 : index
    %23 = vector.load %arg7[%c0_13, %c0_14] : memref<1x32xf32, #tpu.memory_space<vmem>>, vector<1x32xf32>
    %24 = vector.shape_cast %22 : vector<16x8x32xf32> to vector<128x32xf32>
    %cst_15 = arith.constant dense<0.000000e+00> : vector<1x128xf32>
    %25 = tpu.matmul %23, %24, %cst_15 {dimension_numbers = #tpu.dot_dimension_numbers<[1], [1], [0], [0], [0, 0, 1, 0], [], []>} : vector<1x32xf32>, vector<128x32xf32>, vector<1x128xf32> -> vector<1x128xf32>
    %c0_16 = arith.constant 0 : index
    %c0_17 = arith.constant 0 : index
    %c0_18 = arith.constant 0 : index
    %26 = vector.load %arg4[%c0_16, %c0_17, %c0_18] : memref<1x1x128xf32, #tpu.memory_space<vmem>>, vector<1x1x128xf32>
    %27 = vector.shape_cast %26 : vector<1x1x128xf32> to vector<1x128xf32>
    %28 = arith.addf %25, %27 : vector<1x128xf32>
    %c0_19 = arith.constant 0 : index
    %c0_20 = arith.constant 0 : index
    %c0_21 = arith.constant 0 : index
    %29 = vector.load %arg9[%c0_19, %c0_20, %c0_21] : memref<1x1x128xf32, #tpu.memory_space<vmem>>, vector<1x1x128xf32>
    %30 = vector.shape_cast %29 : vector<1x1x128xf32> to vector<1x128xf32>
    %31 = vector.shape_cast %28 : vector<1x128xf32> to vector<1x1x128xf32>
    tpu.vector_store %arg9[%c0_19, %c0_20, %c0_21], %31 {strides = array<i32>} : memref<1x1x128xf32, #tpu.memory_space<vmem>>, vector<1x1x128xf32>,
    %c0_22 = arith.constant 0 : index
    %c0_23 = arith.constant 0 : index
    %c0_24 = arith.constant 0 : index
    %32 = vector.load %arg8[%c0_22, %c0_23, %c0_24] : memref<1x8x1xf32, #tpu.memory_space<vmem>>, vector<1x8x1xf32>
    %33 = vector.broadcast %32 : vector<1x8x1xf32> to vector<16x8x32xf32>
    %34 = arith.mulf %22, %33 : vector<16x8x32xf32>
    %cst_25 = arith.constant dense<0.000000e+00> : vector<16x32xf32>
    %35 = vector.multi_reduction <add>, %34, %cst_25 [1] : vector<16x8x32xf32> to vector<16x32xf32>
    %c0_26 = arith.constant 0 : index
    %c0_27 = arith.constant 0 : index
    %36 = vector.load %arg7[%c0_26, %c0_27] : memref<1x32xf32, #tpu.memory_space<vmem>>, vector<1x32xf32>
    %cst_28 = arith.constant dense<0.000000e+00> : vector<1x16xf32>
    %37 = tpu.matmul %36, %35, %cst_28 {dimension_numbers = #tpu.dot_dimension_numbers<[1], [1], [0], [0], [0, 0, 1, 0], [], []>} : vector<1x32xf32>, vector<16x32xf32>, vector<1x16xf32> -> vector<1x16xf32>
    %c0_29 = arith.constant 0 : index
    %c0_30 = arith.constant 0 : index
    %c0_31 = arith.constant 0 : index
    %38 = vector.load %arg10[%c0_29, %c0_30, %c0_31] : memref<1x1x16xf32, #tpu.memory_space<vmem>>, vector<1x1x16xf32>
    %39 = vector.shape_cast %38 : vector<1x1x16xf32> to vector<1x16xf32>
    %40 = vector.shape_cast %37 : vector<1x16xf32> to vector<1x1x16xf32>
    tpu.vector_store %arg10[%c0_29, %c0_30, %c0_31], %40 {strides = array<i32>} : memref<1x1x16xf32, #tpu.memory_space<vmem>>, vector<1x1x16xf32>,
    return
  }
  func.func @transform_0(%arg0: i32) -> (i32, i32) {
    %c0_i32 = arith.constant 0 : i32
    %c0_i32_0 = arith.constant 0 : i32
    return %arg0, %c0_i32 : i32, i32
  }
  func.func @transform_1(%arg0: i32) -> (i32, i32, i32) {
    %c0_i32 = arith.constant 0 : i32
    %c0_i32_0 = arith.constant 0 : i32
    %c0_i32_1 = arith.constant 0 : i32
    return %arg0, %c0_i32, %c0_i32_0 : i32, i32, i32
  }
  func.func @transform_2(%arg0: i32) -> (i32, i32) {
    %c0_i32 = arith.constant 0 : i32
    %c0_i32_0 = arith.constant 0 : i32
    return %arg0, %c0_i32 : i32, i32
  }
  func.func @transform_3(%arg0: i32) -> (i32, i32, i32) {
    %c0_i32 = arith.constant 0 : i32
    %c0_i32_0 = arith.constant 0 : i32
    %c0_i32_1 = arith.constant 0 : i32
    return %arg0, %c0_i32, %c0_i32_0 : i32, i32, i32
  }
  func.func @transform_4(%arg0: i32) -> (i32, i32) {
    %c0_i32 = arith.constant 0 : i32
    %c0_i32_0 = arith.constant 0 : i32
    %c0_i32_1 = arith.constant 0 : i32
    return %c0_i32, %c0_i32_0 : i32, i32
  }
  func.func @transform_5(%arg0: i32) -> (i32, i32) {
    %c0_i32 = arith.constant 0 : i32
    %c0_i32_0 = arith.constant 0 : i32
    %c0_i32_1 = arith.constant 0 : i32
    return %c0_i32, %c0_i32_0 : i32, i32
  }
  func.func @transform_6(%arg0: i32) -> (i32, i32) {
    %c0_i32 = arith.constant 0 : i32
    %c0_i32_0 = arith.constant 0 : i32
    %c0_i32_1 = arith.constant 0 : i32
    return %c0_i32, %c0_i32_0 : i32, i32
  }
  func.func @transform_7(%arg0: i32) -> (i32, i32, i32) {
    %c0_i32 = arith.constant 0 : i32
    %c0_i32_0 = arith.constant 0 : i32
    %c0_i32_1 = arith.constant 0 : i32
    %c0_i32_2 = arith.constant 0 : i32
    return %c0_i32, %c0_i32_0, %c0_i32_1 : i32, i32, i32
  }
  func.func @transform_8(%arg0: i32) -> (i32, i32, i32) {
    %c0_i32 = arith.constant 0 : i32
    %c0_i32_0 = arith.constant 0 : i32
    %c0_i32_1 = arith.constant 0 : i32
    return %arg0, %c0_i32, %c0_i32_0 : i32, i32, i32
  }
  func.func @transform_9(%arg0: i32) -> (i32, i32, i32) {
    %c0_i32 = arith.constant 0 : i32
    %c0_i32_0 = arith.constant 0 : i32
    %c0_i32_1 = arith.constant 0 : i32
    return %arg0, %c0_i32, %c0_i32_0 : i32, i32, i32
  }
}

</mosaic_0001>

<llo_original>
// kernel: tpu_custom_call.1
$region0: #{tpu_custom_call.1}
  #allocation0 [shape = 'u32[]', space=smem, size = 0x4, offset = 0x4, fixed_abs, tag = 'smem constant byte address 0x4 - core index']
  #allocation1 [shape = 'u32[72,128]{1,0:T(1,128)}', space=vmem, size = 0x9000, scoped, tag = 'internal scratch']
  %s0 = inlined_call_operand.vmem [shape: f32[64,32], index: 0, kind: input, shape index: {}]
  %s1 = inlined_call_operand.vmem [shape: f32[64,8,48], index: 1, kind: input, shape index: {}]
  %s2 = inlined_call_operand.vmem [shape: f32[64,32], index: 2, kind: input, shape index: {}]
  %s3 = inlined_call_operand.vmem [shape: f32[4,1,128], index: 3, kind: input, shape index: {}]
  %s4 = inlined_call_operand.vmem [shape: f32[48,32], index: 4, kind: input, shape index: {}]
  %s5 = inlined_call_operand.vmem [shape: f32[32,32], index: 5, kind: input, shape index: {}]
  %s6 = inlined_call_operand.vmem [shape: f32[1,32], index: 6, kind: input, shape index: {}]
  %s7 = inlined_call_operand.vmem [shape: f32[1,8,1], index: 7, kind: input, shape index: {}]
  %s8 = inlined_call_operand.hbm [shape: f32[4,1,128], index: 8, kind: output, shape index: {0}]
  %s9 = inlined_call_operand.hbm [shape: f32[4,1,16], index: 9, kind: output, shape index: {1}]
  %10 = xla_tuple %s8, %s9
  %s11 = sld [smem:[#allocation0]]
  $region73: #{tpu_custom_call.1} parent=0
    _
  %s13 = ssub.s32 1, %s11
  %s14 = scalar_select 0, %s13, %s11
  $region1: #{tpu_custom_call.1} parent=0
    #allocation2 [shape = 'u8[1024]{0}', space=vmem, size = 0x400, scoped, tag = 'output window, operand 0']
    #allocation3 [shape = 's32[2]{0}', space=sflag, size = 0x8, scoped, tag = 'scoped memory for tpu_custom_call.1']
    #allocation4 [shape = 'u8[1024]{0}', space=vmem, size = 0x400, scoped, tag = 'output window, operand 1']
    #allocation5 [shape = 's32[2]{0}', space=sflag, size = 0x8, scoped, tag = 'scoped memory for tpu_custom_call.1']
    %15 = vsyncpa [#allocation3], 0
    %s16 = scalar_lea.sflag [#allocation3], 1
    %17 = vsyncpa %s16, 0
    %18 = vsyncpa [#allocation5], 0
    %s19 = scalar_lea.sflag [#allocation5], 1
    %20 = vsyncpa %s19, 0
    loop: start=0, step=1, limit=6
    $region2: #{tpu_custom_call.1} parent=1 // loop_pre_header
      _
    $region3: #{tpu_custom_call.1} parent=1 // loop_header
      %s22 = sphi 0, %s26
      %p23 = scmp.ge.s32.totalorder %s22, 6
      %s32 = sphi 0, %s34
      %s35 = sphi 0, %s32
      %s36 = sphi 0, %s35
      %s52 = sphi 0, %s36
      %s58 = sphi 0, %s60
      %s61 = sphi 0, %s58
      %s62 = sphi 0, %s61
      %s78 = sphi 0, %s62
      %s84 = sphi 0, %s86
      %s87 = sphi 0, %s84
      %s88 = sphi 0, %s87
      %s104 = sphi 0, %s88
      %s110 = sphi 0, %s112
      %s113 = sphi 0, %s110
      %s114 = sphi 0, %s113
      %s130 = sphi 0, %s114
      %s134 = sphi 0, %s134
      %s136 = sphi 0, %s134
      %s137 = sphi 0, %s136
      %s151 = sphi 0, %s137
      %s155 = sphi 0, %s155
      %s157 = sphi 0, %s155
      %s158 = sphi 0, %s157
      %s172 = sphi 0, %s158
      %s176 = sphi 0, %s176
      %s178 = sphi 0, %s176
      %s179 = sphi 0, %s178
      %s193 = sphi 0, %s179
      %s197 = sphi 0, %s197
      %s199 = sphi 0, %s197
      %s200 = sphi 0, %s199
      %s214 = sphi 0, %s200
      %s220 = sphi 0, %s222
      %s223 = sphi 0, %s220
      %s224 = sphi 0, %s223
      %s240 = sphi 0, %s224
      %s246 = sphi 0, %s248
      %s249 = sphi 0, %s246
      %s250 = sphi 0, %s249
      %s266 = sphi 0, %s250
    $region4: #{tpu_custom_call.1} parent=1 // loop_header_branch
      %25 = sbr.rel (%p23) target = $region8
    $region5: #{tpu_custom_call.1} parent=1 // loop_body
      %s27 = ssub.s32 %s22, 1
      %s28 = ssub.s32 %s22, 2
      %s29 = sadd.s32 %s22, 1
      %s30 = ssub.s32 %s22, %s29
      %p31 = scmp.eq.s32.totalorder %s30, 0
      %s33 = sadd.s32 %s32, 1
      %s34 = scalar_select %p31, %s32, %s33
      %p37 = pneg %p31
      %p38 = scmp.eq.s32.totalorder %s22, 3
      %p39 = por %p37, %p38
      %p40 = scmp.ne.s32.totalorder %s32, %s35
      %p41 = scmp.eq.s32.totalorder %s22, 0
      %p42 = por %p40, %p41
      %p43 = scmp.ne.s32.totalorder %s32, %s35
      %p44 = scmp.eq.s32.totalorder %s27, 3
      %p45 = por %p43, %p44
      %p46 = scmp.ne.s32.totalorder %s35, %s36
      %p47 = scmp.eq.s32.totalorder %s27, 0
      %p48 = por %p46, %p47
      %p49 = scmp.ne.s32.totalorder %s35, %s36
      %p50 = scmp.eq.s32.totalorder %s28, 3
      %p51 = por %p49, %p50
      %p53 = scmp.ne.s32.totalorder %s36, %s52
      %p54 = scmp.eq.s32.totalorder %s28, 0
      %p55 = por %p53, %p54
      %s56 = ssub.s32 %s22, %s29
      %p57 = scmp.eq.s32.totalorder %s56, 0
      %s59 = sadd.s32 %s58, 1
      %s60 = scalar_select %p57, %s58, %s59
      %p63 = pneg %p57
      %p64 = scmp.eq.s32.totalorder %s22, 3
      %p65 = por %p63, %p64
      %p66 = scmp.ne.s32.totalorder %s58, %s61
      %p67 = scmp.eq.s32.totalorder %s22, 0
      %p68 = por %p66, %p67
      %p69 = scmp.ne.s32.totalorder %s58, %s61
      %p70 = scmp.eq.s32.totalorder %s27, 3
      %p71 = por %p69, %p70
      %p72 = scmp.ne.s32.totalorder %s61, %s62
      %p73 = scmp.eq.s32.totalorder %s27, 0
      %p74 = por %p72, %p73
      %p75 = scmp.ne.s32.totalorder %s61, %s62
      %p76 = scmp.eq.s32.totalorder %s28, 3
      %p77 = por %p75, %p76
      %p79 = scmp.ne.s32.totalorder %s62, %s78
      %p80 = scmp.eq.s32.totalorder %s28, 0
      %p81 = por %p79, %p80
      %s82 = ssub.s32 %s22, %s29
      %p83 = scmp.eq.s32.totalorder %s82, 0
      %s85 = sadd.s32 %s84, 1
      %s86 = scalar_select %p83, %s84, %s85
      %p89 = pneg %p83
      %p90 = scmp.eq.s32.totalorder %s22, 3
      %p91 = por %p89, %p90
      %p92 = scmp.ne.s32.totalorder %s84, %s87
      %p93 = scmp.eq.s32.totalorder %s22, 0
      %p94 = por %p92, %p93
      %p95 = scmp.ne.s32.totalorder %s84, %s87
      %p96 = scmp.eq.s32.totalorder %s27, 3
      %p97 = por %p95, %p96
      %p98 = scmp.ne.s32.totalorder %s87, %s88
      %p99 = scmp.eq.s32.totalorder %s27, 0
      %p100 = por %p98, %p99
      %p101 = scmp.ne.s32.totalorder %s87, %s88
      %p102 = scmp.eq.s32.totalorder %s28, 3
      %p103 = por %p101, %p102
      %p105 = scmp.ne.s32.totalorder %s88, %s104
      %p106 = scmp.eq.s32.totalorder %s28, 0
      %p107 = por %p105, %p106
      %s108 = ssub.s32 %s22, %s29
      %p109 = scmp.eq.s32.totalorder %s108, 0
      %s111 = sadd.s32 %s110, 1
      %s112 = scalar_select %p109, %s110, %s111
      %p115 = pneg %p109
      %p116 = scmp.eq.s32.totalorder %s22, 3
      %p117 = por %p115, %p116
      %p118 = scmp.ne.s32.totalorder %s110, %s113
      %p119 = scmp.eq.s32.totalorder %s22, 0
      %p120 = por %p118, %p119
      %p121 = scmp.ne.s32.totalorder %s110, %s113
      %p122 = scmp.eq.s32.totalorder %s27, 3
      %p123 = por %p121, %p122
      %p124 = scmp.ne.s32.totalorder %s113, %s114
      %p125 = scmp.eq.s32.totalorder %s27, 0
      %p126 = por %p124, %p125
      %p127 = scmp.ne.s32.totalorder %s113, %s114
      %p128 = scmp.eq.s32.totalorder %s28, 3
      %p129 = por %p127, %p128
      %p131 = scmp.ne.s32.totalorder %s114, %s130
      %p132 = scmp.eq.s32.totalorder %s28, 0
      %p133 = por %p131, %p132
      %s135 = sadd.s32 %s134, 1
      %p138 = scmp.eq.s32.totalorder %s22, 3
      %p139 = scmp.ne.s32.totalorder %s134, %s136
      %p140 = scmp.eq.s32.totalorder %s22, 0
      %p141 = por %p139, %p140
      %p142 = scmp.ne.s32.totalorder %s134, %s136
      %p143 = scmp.eq.s32.totalorder %s27, 3
      %p144 = por %p142, %p143
      %p145 = scmp.ne.s32.totalorder %s136, %s137
      %p146 = scmp.eq.s32.totalorder %s27, 0
      %p147 = por %p145, %p146
      %p148 = scmp.ne.s32.totalorder %s136, %s137
      %p149 = scmp.eq.s32.totalorder %s28, 3
      %p150 = por %p148, %p149
      %p152 = scmp.ne.s32.totalorder %s137, %s151
      %p153 = scmp.eq.s32.totalorder %s28, 0
      %p154 = por %p152, %p153
      %s156 = sadd.s32 %s155, 1
      %p159 = scmp.eq.s32.totalorder %s22, 3
      %p160 = scmp.ne.s32.totalorder %s155, %s157
      %p161 = scmp.eq.s32.totalorder %s22, 0
      %p162 = por %p160, %p161
      %p163 = scmp.ne.s32.totalorder %s155, %s157
      %p164 = scmp.eq.s32.totalorder %s27, 3
      %p165 = por %p163, %p164
      %p166 = scmp.ne.s32.totalorder %s157, %s158
      %p167 = scmp.eq.s32.totalorder %s27, 0
      %p168 = por %p166, %p167
      %p169 = scmp.ne.s32.totalorder %s157, %s158
      %p170 = scmp.eq.s32.totalorder %s28, 3
      %p171 = por %p169, %p170
      %p173 = scmp.ne.s32.totalorder %s158, %s172
      %p174 = scmp.eq.s32.totalorder %s28, 0
      %p175 = por %p173, %p174
      %s177 = sadd.s32 %s176, 1
      %p180 = scmp.eq.s32.totalorder %s22, 3
      %p181 = scmp.ne.s32.totalorder %s176, %s178
      %p182 = scmp.eq.s32.totalorder %s22, 0
      %p183 = por %p181, %p182
      %p184 = scmp.ne.s32.totalorder %s176, %s178
      %p185 = scmp.eq.s32.totalorder %s27, 3
      %p186 = por %p184, %p185
      %p187 = scmp.ne.s32.totalorder %s178, %s179
      %p188 = scmp.eq.s32.totalorder %s27, 0
      %p189 = por %p187, %p188
      %p190 = scmp.ne.s32.totalorder %s178, %s179
      %p191 = scmp.eq.s32.totalorder %s28, 3
      %p192 = por %p190, %p191
      %p194 = scmp.ne.s32.totalorder %s179, %s193
      %p195 = scmp.eq.s32.totalorder %s28, 0
      %p196 = por %p194, %p195
      %s198 = sadd.s32 %s197, 1
      %p201 = scmp.eq.s32.totalorder %s22, 3
      %p202 = scmp.ne.s32.totalorder %s197, %s199
      %p203 = scmp.eq.s32.totalorder %s22, 0
      %p204 = por %p202, %p203
      %p205 = scmp.ne.s32.totalorder %s197, %s199
      %p206 = scmp.eq.s32.totalorder %s27, 3
      %p207 = por %p205, %p206
      %p208 = scmp.ne.s32.totalorder %s199, %s200
      %p209 = scmp.eq.s32.totalorder %s27, 0
      %p210 = por %p208, %p209
      %p211 = scmp.ne.s32.totalorder %s199, %s200
      %p212 = scmp.eq.s32.totalorder %s28, 3
      %p213 = por %p211, %p212
      %p215 = scmp.ne.s32.totalorder %s200, %s214
      %p216 = scmp.eq.s32.totalorder %s28, 0
      %p217 = por %p215, %p216
      %s218 = ssub.s32 %s22, %s29
      %p219 = scmp.eq.s32.totalorder %s218, 0
      %s221 = sadd.s32 %s220, 1
      %s222 = scalar_select %p219, %s220, %s221
      %p225 = pneg %p219
      %p226 = scmp.eq.s32.totalorder %s22, 3
      %p227 = por %p225, %p226
      %p228 = scmp.ne.s32.totalorder %s220, %s223
      %p229 = scmp.eq.s32.totalorder %s22, 0
      %p230 = por %p228, %p229
      %p231 = scmp.ne.s32.totalorder %s220, %s223
      %p232 = scmp.eq.s32.totalorder %s27, 3
      %p233 = por %p231, %p232
      %p234 = scmp.ne.s32.totalorder %s223, %s224
      %p235 = scmp.eq.s32.totalorder %s27, 0
      %p236 = por %p234, %p235
      %p237 = scmp.ne.s32.totalorder %s223, %s224
      %p238 = scmp.eq.s32.totalorder %s28, 3
      %p239 = por %p237, %p238
      %p241 = scmp.ne.s32.totalorder %s224, %s240
      %p242 = scmp.eq.s32.totalorder %s28, 0
      %p243 = por %p241, %p242
      %s244 = ssub.s32 %s22, %s29
      %p245 = scmp.eq.s32.totalorder %s244, 0
      %s247 = sadd.s32 %s246, 1
      %s248 = scalar_select %p245, %s246, %s247
      %p251 = pneg %p245
      %p252 = scmp.eq.s32.totalorder %s22, 3
      %p253 = por %p251, %p252
      %p254 = scmp.ne.s32.totalorder %s246, %s249
      %p255 = scmp.eq.s32.totalorder %s22, 0
      %p256 = por %p254, %p255
      %p257 = scmp.ne.s32.totalorder %s246, %s249
      %p258 = scmp.eq.s32.totalorder %s27, 3
      %p259 = por %p257, %p258
      %p260 = scmp.ne.s32.totalorder %s249, %s250
      %p261 = scmp.eq.s32.totalorder %s27, 0
      %p262 = por %p260, %p261
      %p263 = scmp.ne.s32.totalorder %s249, %s250
      %p264 = scmp.eq.s32.totalorder %s28, 3
      %p265 = por %p263, %p264
      %p267 = scmp.ne.s32.totalorder %s250, %s266
      %p268 = scmp.eq.s32.totalorder %s28, 0
      %p269 = por %p267, %p268
      %p270 = scmp.le.s32.totalorder 1, %s22
      %p271 = scmp.lt.s32.totalorder %s22, 5
      %p272 = pnand %p270, %p271
      %p273 = pneg %p272
      // Predicated region
      $region9: #{tpu_custom_call.1} parent=5 // pred_check
        _
      $region10: #{tpu_custom_call.1} parent=5 // pred_check_branch
        %275 = sbr.rel (%p272) target = $region12
      $region11: #{tpu_custom_call.1} parent=5 // pred_region
        %s276 = ssub.s32 %s22, 1
        // Predicated region
        $region13: #{tpu_custom_call.1} parent=11 // pred_check
          %p277 = pneg %p147
        $region14: #{tpu_custom_call.1} parent=11 // pred_check_branch
          %279 = sbr.rel (%p277) target = $region16
        $region15: #{tpu_custom_call.1} parent=11 // pred_region
          _
        $region16: #{tpu_custom_call.1} parent=11 // pred_fallthru
          _
        // Predicated region
        $region17: #{tpu_custom_call.1} parent=11 // pred_check
          %p280 = pneg %p168
        $region18: #{tpu_custom_call.1} parent=11 // pred_check_branch
          %282 = sbr.rel (%p280) target = $region20
        $region19: #{tpu_custom_call.1} parent=11 // pred_region
          _
        $region20: #{tpu_custom_call.1} parent=11 // pred_fallthru
          _
        // Predicated region
        $region21: #{tpu_custom_call.1} parent=11 // pred_check
          %p283 = pneg %p189
        $region22: #{tpu_custom_call.1} parent=11 // pred_check_branch
          %285 = sbr.rel (%p283) target = $region24
        $region23: #{tpu_custom_call.1} parent=11 // pred_region
          _
        $region24: #{tpu_custom_call.1} parent=11 // pred_fallthru
          _
        // Predicated region
        $region25: #{tpu_custom_call.1} parent=11 // pred_check
          %p286 = pneg %p210
        $region26: #{tpu_custom_call.1} parent=11 // pred_check_branch
          %288 = sbr.rel (%p286) target = $region28
        $region27: #{tpu_custom_call.1} parent=11 // pred_region
          _
        $region28: #{tpu_custom_call.1} parent=11 // pred_fallthru
          _
      $region12: #{tpu_custom_call.1} parent=5 // pred_fallthru
        _
      %p289 = scmp.lt.s32.totalorder %s22, 4
      // Predicated region
      $region29: #{tpu_custom_call.1} parent=5 // pred_check
        %p290 = pneg %p289
      $region30: #{tpu_custom_call.1} parent=5 // pred_check_branch
        %292 = sbr.rel (%p290) target = $region32
      $region31: #{tpu_custom_call.1} parent=5 // pred_region
        // Predicated region
        $region33: #{tpu_custom_call.1} parent=31 // pred_check
          %p293 = pneg %p42
        $region34: #{tpu_custom_call.1} parent=31 // pred_check_branch
          %295 = sbr.rel (%p293) target = $region36
        $region35: #{tpu_custom_call.1} parent=31 // pred_region
          %s296 = smul.u32 2, %s22
          %p297 = scmp.lt.s32.totalorder %s296, 7
          %s298 = scalar_select %p297, %s296, 7
          %s299 = smul.addr %s298, 8
          %s300 = scalar_lea.vmem %s0, %s299
          %s301 = smul.u32 2, %s22
        $region36: #{tpu_custom_call.1} parent=31 // pred_fallthru
          _
        // Predicated region
        $region37: #{tpu_custom_call.1} parent=31 // pred_check
          %p302 = pneg %p68
        $region38: #{tpu_custom_call.1} parent=31 // pred_check_branch
          %304 = sbr.rel (%p302) target = $region40
        $region39: #{tpu_custom_call.1} parent=31 // pred_region
          %s305 = smul.u32 16, %s22
          %p306 = scmp.lt.s32.totalorder %s305, 63
          %s307 = scalar_select %p306, %s305, 63
          %s308 = smul.addr %s307, 8
          %s309 = scalar_lea.vmem %s1, %s308
          %s310 = smul.u32 16, %s22
        $region40: #{tpu_custom_call.1} parent=31 // pred_fallthru
          _
        // Predicated region
        $region41: #{tpu_custom_call.1} parent=31 // pred_check
          %p311 = pneg %p94
        $region42: #{tpu_custom_call.1} parent=31 // pred_check_branch
          %313 = sbr.rel (%p311) target = $region44
        $region43: #{tpu_custom_call.1} parent=31 // pred_region
          %s314 = smul.u32 2, %s22
          %p315 = scmp.lt.s32.totalorder %s314, 7
          %s316 = scalar_select %p315, %s314, 7
          %s317 = smul.addr %s316, 8
          %s318 = scalar_lea.vmem %s2, %s317
          %s319 = smul.u32 2, %s22
        $region44: #{tpu_custom_call.1} parent=31 // pred_fallthru
          _
        // Predicated region
        $region45: #{tpu_custom_call.1} parent=31 // pred_check
          %p320 = pneg %p120
        $region46: #{tpu_custom_call.1} parent=31 // pred_check_branch
          %322 = sbr.rel (%p320) target = $region48
        $region47: #{tpu_custom_call.1} parent=31 // pred_region
          %p323 = scmp.lt.s32.totalorder %s22, 3
          %s324 = scalar_select %p323, %s22, 3
          %s325 = scalar_lea.vmem %s3, %s324
        $region48: #{tpu_custom_call.1} parent=31 // pred_fallthru
          _
      $region32: #{tpu_custom_call.1} parent=5 // pred_fallthru
        _
      %p326 = scmp.le.s32.totalorder 1, %s22
      %p327 = scmp.lt.s32.totalorder %s22, 5
      %p328 = pnand %p326, %p327
      %p329 = pneg %p328
      // Predicated region
      $region49: #{tpu_custom_call.1} parent=5 // pred_check
        _
      $region50: #{tpu_custom_call.1} parent=5 // pred_check_branch
        %331 = sbr.rel (%p328) target = $region52
      $region51: #{tpu_custom_call.1} parent=5 // pred_region
        %s332 = ssub.s32 %s22, 1
        %s333 = smul.u32 2, %s27
        %p334 = scmp.lt.s32.totalorder %s333, 7
        %s335 = scalar_select %p334, %s333, 7
        %s336 = smul.addr %s335, 8
        %s337 = scalar_lea.vmem %s0, %s336
        %p338 = pneg %p48
        %p339 = pneg %p45
        %s340 = smul.u32 16, %s27
        %p341 = scmp.lt.s32.totalorder %s340, 63
        %s342 = scalar_select %p341, %s340, 63
        %s343 = smul.addr %s342, 8
        %s344 = scalar_lea.vmem %s1, %s343
        %p345 = pneg %p74
        %p346 = pneg %p71
        %s347 = smul.u32 2, %s27
        %p348 = scmp.lt.s32.totalorder %s347, 7
        %s349 = scalar_select %p348, %s347, 7
        %s350 = smul.addr %s349, 8
        %s351 = scalar_lea.vmem %s2, %s350
        %p352 = pneg %p100
        %p353 = pneg %p97
        %p354 = scmp.lt.s32.totalorder %s27, 3
        %s355 = scalar_select %p354, %s27, 3
        %s356 = scalar_lea.vmem %s3, %s355
        %p357 = pneg %p126
        %p358 = pneg %p123
        %p359 = pneg %p147
        %p360 = pneg %p144
        %p361 = pneg %p168
        %p362 = pneg %p165
        %p363 = pneg %p189
        %p364 = pneg %p186
        %p365 = pneg %p210
        %p366 = pneg %p207
        %p367 = pneg %p236
        %p368 = pneg %p233
        %s369 = sand.u32 %s223, 1
        %s370 = scalar_lea.sflag [#allocation3], %s369
        %s371 = sand.u32 %s223, 1
        %s372 = scalar_lea.vmem [#allocation2], %s371
        %p373 = pneg %p262
        %p374 = pneg %p259
        %s375 = sand.u32 %s249, 1
        %s376 = scalar_lea.sflag [#allocation5], %s375
        %s377 = sand.u32 %s249, 1
        %s378 = scalar_lea.vmem [#allocation4], %s377
        %s379 = smul.u32 2, %s27
        %p380 = scmp.lt.s32.totalorder %s379, 7
        %s381 = scalar_select %p380, %s379, 7
        %s382 = smul.addr %s381, 8
        %s383 = scalar_lea.vmem %s0, %s382
        %s384 = smul.u32 2, %s27
        %s385 = smul.u32 16, %s27
        %p386 = scmp.lt.s32.totalorder %s385, 63
        %s387 = scalar_select %p386, %s385, 63
        %s388 = smul.addr %s387, 8
        %s389 = scalar_lea.vmem %s1, %s388
        %s390 = smul.u32 16, %s27
        %s391 = smul.u32 2, %s27
        %p392 = scmp.lt.s32.totalorder %s391, 7
        %s393 = scalar_select %p392, %s391, 7
        %s394 = smul.addr %s393, 8
        %s395 = scalar_lea.vmem %s2, %s394
        %s396 = smul.u32 2, %s27
        %p397 = scmp.lt.s32.totalorder %s27, 3
        %s398 = scalar_select %p397, %s27, 3
        %s399 = scalar_lea.vmem %s3, %s398
        %v400 = vld [vmem:[%s389] sm:$0xff]
        %v401 = vld [vmem:[%s389 + $0x8] sm:$0xff]
        %v402 = vld [vmem:[%s389 + $0x10] sm:$0xff]
        %v403 = vld [vmem:[%s389 + $0x18] sm:$0xff]
        %v404 = vld [vmem:[%s389 + $0x20] sm:$0xff]
        %v405 = vld [vmem:[%s389 + $0x28] sm:$0xff]
        %v406 = vld [vmem:[%s389 + $0x30] sm:$0xff]
        %v407 = vld [vmem:[%s389 + $0x38] sm:$0xff]
        %v408 = vld [vmem:[%s389 + $0x40] sm:$0xff]
        %v409 = vld [vmem:[%s389 + $0x48] sm:$0xff]
        %v410 = vld [vmem:[%s389 + $0x50] sm:$0xff]
        %v411 = vld [vmem:[%s389 + $0x58] sm:$0xff]
        %v412 = vld [vmem:[%s389 + $0x60] sm:$0xff]
        %v413 = vld [vmem:[%s389 + $0x68] sm:$0xff]
        %v414 = vld [vmem:[%s389 + $0x70] sm:$0xff]
        %v415 = vld [vmem:[%s389 + $0x78] sm:$0xff]
        %v416 = vld [vmem:[%s383] sm:$0xff]
        %v417 = vld [vmem:[%s383 + $0x8] sm:$0xff]
        %v420 = vrot.slane %v416, 1
        %v421 = vrot.slane %v416, 2
        %v422 = vrot.slane %v416, 3
        %v423 = vrot.slane %v416, 4
        %v424 = vrot.slane %v416, 5
        %v425 = vrot.slane %v416, 6
        %v426 = vrot.slane %v416, 7
        %v427 = vrot.slane %v417, 1
        %v428 = vrot.slane %v417, 2
        %v429 = vrot.slane %v417, 3
        %v430 = vrot.slane %v417, 4
        %v431 = vrot.slane %v417, 5
        %v432 = vrot.slane %v417, 6
        %v433 = vrot.slane %v417, 7
        %v434 = vperm.slane %v416, 0
        %v435 = vperm.slane %v420, 0
        %v436 = vperm.slane %v421, 0
        %v437 = vperm.slane %v422, 0
        %v438 = vperm.slane %v423, 0
        %v439 = vperm.slane %v424, 0
        %v440 = vperm.slane %v425, 0
        %v441 = vperm.slane %v426, 0
        %v442 = vperm.slane %v417, 0
        %v443 = vperm.slane %v427, 0
        %v444 = vperm.slane %v428, 0
        %v445 = vperm.slane %v429, 0
        %v446 = vperm.slane %v430, 0
        %v447 = vperm.slane %v431, 0
        %v448 = vperm.slane %v432, 0
        %v449 = vperm.slane %v433, 0
        %v466 = vmul.f32 %v434, %v400
        %v467 = vmul.f32 %v435, %v401
        %v468 = vmul.f32 %v436, %v402
        %v469 = vmul.f32 %v437, %v403
        %v470 = vmul.f32 %v438, %v404
        %v471 = vmul.f32 %v439, %v405
        %v472 = vmul.f32 %v440, %v406
        %v473 = vmul.f32 %v441, %v407
        %v474 = vmul.f32 %v442, %v408
        %v475 = vmul.f32 %v443, %v409
        %v476 = vmul.f32 %v444, %v410
        %v477 = vmul.f32 %v445, %v411
        %v478 = vmul.f32 %v446, %v412
        %v479 = vmul.f32 %v447, %v413
        %v480 = vmul.f32 %v448, %v414
        %v481 = vmul.f32 %v449, %v415
        %v482 = vld [vmem:[%s4] sm:$0xff]
        %v483 = vld [vmem:[%s4 + $0x8] sm:$0xff]
        %v484 = vld [vmem:[%s4 + $0x10] sm:$0xff]
        %v485 = vld [vmem:[%s4 + $0x18] sm:$0xff]
        %v486 = vld [vmem:[%s4 + $0x20] sm:$0xff]
        %v487 = vld [vmem:[%s4 + $0x28] sm:$0xff]
        %v488 = vld [vmem:[%s5] sm:$0xff]
        %v489 = vld [vmem:[%s5 + $0x8] sm:$0xff]
        %v490 = vld [vmem:[%s5 + $0x10] sm:$0xff]
        %v491 = vld [vmem:[%s5 + $0x18] sm:$0xff]
        %vm492 = vcmask 261120
        %v494 = vsel %vm492, %v466, 0
        %v497 = vsel %vm492, %v467, 0
        %v500 = vsel %vm492, %v468, 0
        %v503 = vsel %vm492, %v469, 0
        %v506 = vsel %vm492, %v470, 0
        %v509 = vsel %vm492, %v471, 0
        %v512 = vsel %vm492, %v472, 0
        %v515 = vsel %vm492, %v473, 0
        %v518 = vsel %vm492, %v474, 0
        %v521 = vsel %vm492, %v475, 0
        %v524 = vsel %vm492, %v476, 0
        %v527 = vsel %vm492, %v477, 0
        %v530 = vsel %vm492, %v478, 0
        %v533 = vsel %vm492, %v479, 0
        %v536 = vsel %vm492, %v480, 0
        %v539 = vsel %vm492, %v481, 0
        %541 = vmatpush.msra.mxu0 0.0
        %542 = vmatpush.msra.mxu0 0.0
        %543 = vmatpush.msra.mxu0 0.0
        %544 = vmatpush.msra.mxu0 0.0
        %545 = vmatpush.msra.mxu0 0.0
        %546 = vmatpush.msra.mxu0 0.0
        %547 = vmatpush.msra.mxu0 0.0
        %548 = vmatpush.msra.mxu0 0.0
        %549 = vmatpush.msra.mxu0 0.0
        %550 = vmatpush.msra.mxu0 0.0
        %551 = vmatpush.msra.mxu0 0.0
        %552 = vmatpush.msra.mxu0 0.0
        %553 = vmatpush.msra.mxu0 %v491
        %554 = vmatpush.msra.mxu0 %v490
        %555 = vmatpush.msra.mxu0 %v489
        %556 = vmatpush.msra.mxu0 %v488
        %557 = vmatmul.f32.gmra.mxu0 %v494
        %v558 = vpop.f32.mrf.mxu0
        %v559 = vadd.f32 0.0, %v558
        %560 = vmatmul.f32.gmra.mxu0 %v497
        %v561 = vpop.f32.mrf.mxu0
        %v562 = vadd.f32 0.0, %v561
        %563 = vmatmul.f32.gmra.mxu0 %v500
        %v564 = vpop.f32.mrf.mxu0
        %v565 = vadd.f32 0.0, %v564
        %566 = vmatmul.f32.gmra.mxu0 %v503
        %v567 = vpop.f32.mrf.mxu0
        %v568 = vadd.f32 0.0, %v567
        %569 = vmatmul.f32.gmra.mxu0 %v506
        %v570 = vpop.f32.mrf.mxu0
        %v571 = vadd.f32 0.0, %v570
        %572 = vmatmul.f32.gmra.mxu0 %v509
        %v573 = vpop.f32.mrf.mxu0
        %v574 = vadd.f32 0.0, %v573
        %575 = vmatmul.f32.gmra.mxu0 %v512
        %v576 = vpop.f32.mrf.mxu0
        %v577 = vadd.f32 0.0, %v576
        %578 = vmatmul.f32.gmra.mxu0 %v515
        %v579 = vpop.f32.mrf.mxu0
        %v580 = vadd.f32 0.0, %v579
        %581 = vmatmul.f32.gmra.mxu0 %v518
        %v582 = vpop.f32.mrf.mxu0
        %v583 = vadd.f32 0.0, %v582
        %584 = vmatmul.f32.gmra.mxu0 %v521
        %v585 = vpop.f32.mrf.mxu0
        %v586 = vadd.f32 0.0, %v585
        %587 = vmatmul.f32.gmra.mxu0 %v524
        %v588 = vpop.f32.mrf.mxu0
        %v589 = vadd.f32 0.0, %v588
        %590 = vmatmul.f32.gmra.mxu0 %v527
        %v591 = vpop.f32.mrf.mxu0
        %v592 = vadd.f32 0.0, %v591
        %593 = vmatmul.f32.gmra.mxu0 %v530
        %v594 = vpop.f32.mrf.mxu0
        %v595 = vadd.f32 0.0, %v594
        %596 = vmatmul.f32.gmra.mxu0 %v533
        %v597 = vpop.f32.mrf.mxu0
        %v598 = vadd.f32 0.0, %v597
        %599 = vmatmul.f32.gmra.mxu0 %v536
        %v600 = vpop.f32.mrf.mxu0
        %v601 = vadd.f32 0.0, %v600
        %602 = vmatmul.f32.gmra.mxu0 %v539
        %v603 = vpop.f32.mrf.mxu0
        %v604 = vadd.f32 0.0, %v603
        %605 = vdwg.mxu0
        %vm606 = vcmask 392192
        %v608 = vsel %vm606, %v400, 0
        %v611 = vsel %vm606, %v401, 0
        %v614 = vsel %vm606, %v402, 0
        %v617 = vsel %vm606, %v403, 0
        %v620 = vsel %vm606, %v404, 0
        %v623 = vsel %vm606, %v405, 0
        %v626 = vsel %vm606, %v406, 0
        %v629 = vsel %vm606, %v407, 0
        %v632 = vsel %vm606, %v408, 0
        %v635 = vsel %vm606, %v409, 0
        %v638 = vsel %vm606, %v410, 0
        %v641 = vsel %vm606, %v411, 0
        %v644 = vsel %vm606, %v412, 0
        %v647 = vsel %vm606, %v413, 0
        %v650 = vsel %vm606, %v414, 0
        %v653 = vsel %vm606, %v415, 0
        %655 = vmatpush.msra.mxu0 0.0
        %656 = vmatpush.msra.mxu0 0.0
        %657 = vmatpush.msra.mxu0 0.0
        %658 = vmatpush.msra.mxu0 0.0
        %659 = vmatpush.msra.mxu0 0.0
        %660 = vmatpush.msra.mxu0 0.0
        %661 = vmatpush.msra.mxu0 0.0
        %662 = vmatpush.msra.mxu0 0.0
        %663 = vmatpush.msra.mxu0 0.0
        %664 = vmatpush.msra.mxu0 0.0
        %665 = vmatpush.msra.mxu0 %v487
        %666 = vmatpush.msra.mxu0 %v486
        %667 = vmatpush.msra.mxu0 %v485
        %668 = vmatpush.msra.mxu0 %v484
        %669 = vmatpush.msra.mxu0 %v483
        %670 = vmatpush.msra.mxu0 %v482
        %671 = vmatmul.f32.gmra.mxu0 %v608
        %v672 = vpop.f32.mrf.mxu0
        %v673 = vadd.f32 %v559, %v672
        %674 = vmatmul.f32.gmra.mxu0 %v611
        %v675 = vpop.f32.mrf.mxu0
        %v676 = vadd.f32 %v562, %v675
        %677 = vmatmul.f32.gmra.mxu0 %v614
        %v678 = vpop.f32.mrf.mxu0
        %v679 = vadd.f32 %v565, %v678
        %680 = vmatmul.f32.gmra.mxu0 %v617
        %v681 = vpop.f32.mrf.mxu0
        %v682 = vadd.f32 %v568, %v681
        %683 = vmatmul.f32.gmra.mxu0 %v620
        %v684 = vpop.f32.mrf.mxu0
        %v685 = vadd.f32 %v571, %v684
        %686 = vmatmul.f32.gmra.mxu0 %v623
        %v687 = vpop.f32.mrf.mxu0
        %v688 = vadd.f32 %v574, %v687
        %689 = vmatmul.f32.gmra.mxu0 %v626
        %v690 = vpop.f32.mrf.mxu0
        %v691 = vadd.f32 %v577, %v690
        %692 = vmatmul.f32.gmra.mxu0 %v629
        %v693 = vpop.f32.mrf.mxu0
        %v694 = vadd.f32 %v580, %v693
        %695 = vmatmul.f32.gmra.mxu0 %v632
        %v696 = vpop.f32.mrf.mxu0
        %v697 = vadd.f32 %v583, %v696
        %698 = vmatmul.f32.gmra.mxu0 %v635
        %v699 = vpop.f32.mrf.mxu0
        %v700 = vadd.f32 %v586, %v699
        %701 = vmatmul.f32.gmra.mxu0 %v638
        %v702 = vpop.f32.mrf.mxu0
        %v703 = vadd.f32 %v589, %v702
        %704 = vmatmul.f32.gmra.mxu0 %v641
        %v705 = vpop.f32.mrf.mxu0
        %v706 = vadd.f32 %v592, %v705
        %707 = vmatmul.f32.gmra.mxu0 %v644
        %v708 = vpop.f32.mrf.mxu0
        %v709 = vadd.f32 %v595, %v708
        %710 = vmatmul.f32.gmra.mxu0 %v647
        %v711 = vpop.f32.mrf.mxu0
        %v712 = vadd.f32 %v598, %v711
        %713 = vmatmul.f32.gmra.mxu0 %v650
        %v714 = vpop.f32.mrf.mxu0
        %v715 = vadd.f32 %v601, %v714
        %716 = vmatmul.f32.gmra.mxu0 %v653
        %v717 = vpop.f32.mrf.mxu0
        %v718 = vadd.f32 %v604, %v717
        %719 = vdwg.mxu0
        %v720 = vld [vmem:[%s395] sm:$0xff]
        %v721 = vld [vmem:[%s395 + $0x8] sm:$0xff]
        %v724 = vrot.slane %v720, 1
        %v725 = vrot.slane %v720, 2
        %v726 = vrot.slane %v720, 3
        %v727 = vrot.slane %v720, 4
        %v728 = vrot.slane %v720, 5
        %v729 = vrot.slane %v720, 6
        %v730 = vrot.slane %v720, 7
        %v731 = vrot.slane %v721, 1
        %v732 = vrot.slane %v721, 2
        %v733 = vrot.slane %v721, 3
        %v734 = vrot.slane %v721, 4
        %v735 = vrot.slane %v721, 5
        %v736 = vrot.slane %v721, 6
        %v737 = vrot.slane %v721, 7
        %v738 = vperm.slane %v720, 0
        %v739 = vperm.slane %v724, 0
        %v740 = vperm.slane %v725, 0
        %v741 = vperm.slane %v726, 0
        %v742 = vperm.slane %v727, 0
        %v743 = vperm.slane %v728, 0
        %v744 = vperm.slane %v729, 0
        %v745 = vperm.slane %v730, 0
        %v746 = vperm.slane %v721, 0
        %v747 = vperm.slane %v731, 0
        %v748 = vperm.slane %v732, 0
        %v749 = vperm.slane %v733, 0
        %v750 = vperm.slane %v734, 0
        %v751 = vperm.slane %v735, 0
        %v752 = vperm.slane %v736, 0
        %v753 = vperm.slane %v737, 0
        %v770 = vadd.f32 %v673, %v738
        %v771 = vadd.f32 %v676, %v739
        %v772 = vadd.f32 %v679, %v740
        %v773 = vadd.f32 %v682, %v741
        %v774 = vadd.f32 %v685, %v742
        %v775 = vadd.f32 %v688, %v743
        %v776 = vadd.f32 %v691, %v744
        %v777 = vadd.f32 %v694, %v745
        %v778 = vadd.f32 %v697, %v746
        %v779 = vadd.f32 %v700, %v747
        %v780 = vadd.f32 %v703, %v748
        %v781 = vadd.f32 %v706, %v749
        %v782 = vadd.f32 %v709, %v750
        %v783 = vadd.f32 %v712, %v751
        %v784 = vadd.f32 %v715, %v752
        %v785 = vadd.f32 %v718, %v753
        %vm786 = vcmp.ge.f32.partialorder %v770, 0.0
        %vm787 = vcmp.ge.f32.partialorder %v771, 0.0
        %vm788 = vcmp.ge.f32.partialorder %v772, 0.0
        %vm789 = vcmp.ge.f32.partialorder %v773, 0.0
        %vm790 = vcmp.ge.f32.partialorder %v774, 0.0
        %vm791 = vcmp.ge.f32.partialorder %v775, 0.0
        %vm792 = vcmp.ge.f32.partialorder %v776, 0.0
        %vm793 = vcmp.ge.f32.partialorder %v777, 0.0
        %vm794 = vcmp.ge.f32.partialorder %v778, 0.0
        %vm795 = vcmp.ge.f32.partialorder %v779, 0.0
        %vm796 = vcmp.ge.f32.partialorder %v780, 0.0
        %vm797 = vcmp.ge.f32.partialorder %v781, 0.0
        %vm798 = vcmp.ge.f32.partialorder %v782, 0.0
        %vm799 = vcmp.ge.f32.partialorder %v783, 0.0
        %vm800 = vcmp.ge.f32.partialorder %v784, 0.0
        %vm801 = vcmp.ge.f32.partialorder %v785, 0.0
        %v802 = vmul.f32 %v770, 0.01
        %v803 = vmul.f32 %v771, 0.01
        %v804 = vmul.f32 %v772, 0.01
        %v805 = vmul.f32 %v773, 0.01
        %v806 = vmul.f32 %v774, 0.01
        %v807 = vmul.f32 %v775, 0.01
        %v808 = vmul.f32 %v776, 0.01
        %v809 = vmul.f32 %v777, 0.01
        %v810 = vmul.f32 %v778, 0.01
        %v811 = vmul.f32 %v779, 0.01
        %v812 = vmul.f32 %v780, 0.01
        %v813 = vmul.f32 %v781, 0.01
        %v814 = vmul.f32 %v782, 0.01
        %v815 = vmul.f32 %v783, 0.01
        %v816 = vmul.f32 %v784, 0.01
        %v817 = vmul.f32 %v785, 0.01
        %v818 = vsel %vm786, %v770, %v802
        %v819 = vsel %vm787, %v771, %v803
        %v820 = vsel %vm788, %v772, %v804
        %v821 = vsel %vm789, %v773, %v805
        %v822 = vsel %vm790, %v774, %v806
        %v823 = vsel %vm791, %v775, %v807
        %v824 = vsel %vm792, %v776, %v808
        %v825 = vsel %vm793, %v777, %v809
        %v826 = vsel %vm794, %v778, %v810
        %v827 = vsel %vm795, %v779, %v811
        %v828 = vsel %vm796, %v780, %v812
        %v829 = vsel %vm797, %v781, %v813
        %v830 = vsel %vm798, %v782, %v814
        %v831 = vsel %vm799, %v783, %v815
        %v832 = vsel %vm800, %v784, %v816
        %v833 = vsel %vm801, %v785, %v817
        %v834 = vld [vmem:[%s6] sm:$0x1]
        %v835 = vld [vmem:[%s399] sm:$0x1]
        %v837 = vsel %vm492, %v834, 0
        %v840 = vsel %vm492, %v818, 0
        %v843 = vsel %vm492, %v819, 0
        %v846 = vsel %vm492, %v820, 0
        %v849 = vsel %vm492, %v821, 0
        %v852 = vsel %vm492, %v822, 0
        %v855 = vsel %vm492, %v823, 0
        %v858 = vsel %vm492, %v824, 0
        %v861 = vsel %vm492, %v825, 0
        %v864 = vsel %vm492, %v826, 0
        %v867 = vsel %vm492, %v827, 0
        %v870 = vsel %vm492, %v828, 0
        %v873 = vsel %vm492, %v829, 0
        %v876 = vsel %vm492, %v830, 0
        %v879 = vsel %vm492, %v831, 0
        %v882 = vsel %vm492, %v832, 0
        %v885 = vsel %vm492, %v833, 0
        %887 = vmatpush.xpose.msra.mxu0 %v885
        %888 = vmatpush.xpose.msra.mxu0 %v882
        %889 = vmatpush.xpose.msra.mxu0 %v879
        %890 = vmatpush.xpose.msra.mxu0 %v876
        %891 = vmatpush.xpose.msra.mxu0 %v873
        %892 = vmatpush.xpose.msra.mxu0 %v870
        %893 = vmatpush.xpose.msra.mxu0 %v867
        %894 = vmatpush.xpose.msra.mxu0 %v864
        %895 = vmatpush.xpose.msra.mxu0 %v861
        %896 = vmatpush.xpose.msra.mxu0 %v858
        %897 = vmatpush.xpose.msra.mxu0 %v855
        %898 = vmatpush.xpose.msra.mxu0 %v852
        %899 = vmatpush.xpose.msra.mxu0 %v849
        %900 = vmatpush.xpose.msra.mxu0 %v846
        %901 = vmatpush.xpose.msra.mxu0 %v843
        %902 = vmatpush.xpose.msra.mxu0 %v840
        %903 = vmatmul.f32.gmra.mxu0 %v837
        %v904 = vpop.f32.mrf.mxu0
        %v905 = vadd.f32 %v835, %v904
        %906 = vdwg.mxu0
        %907 = vst [vmem:[%s372] sm:$0x1] %v905
        %v908 = vld [vmem:[%s7] sm:$0xff]
        %910 = vset.pattern.permute.xlu0 0
        %911 = vperm.xlu0 %910, %v908
        %v912 = vpop.permute.xlu0 %911
        %v914 = vmul.f32 %v818, %v912
        %v915 = vmul.f32 %v819, %v912
        %v916 = vmul.f32 %v820, %v912
        %v917 = vmul.f32 %v821, %v912
        %v918 = vmul.f32 %v822, %v912
        %v919 = vmul.f32 %v823, %v912
        %v920 = vmul.f32 %v824, %v912
        %v921 = vmul.f32 %v825, %v912
        %v922 = vmul.f32 %v826, %v912
        %v923 = vmul.f32 %v827, %v912
        %v924 = vmul.f32 %v828, %v912
        %v925 = vmul.f32 %v829, %v912
        %v926 = vmul.f32 %v830, %v912
        %v927 = vmul.f32 %v831, %v912
        %v928 = vmul.f32 %v832, %v912
        %v929 = vmul.f32 %v833, %v912
        %v930 = vsel %vm492, %v914, 0.0
        %v931 = vrot.slane %v930, 4
        %v932 = vadd.f32 %v930, %v931
        %v933 = vrot.slane %v932, 2
        %v934 = vadd.f32 %v932, %v933
        %v935 = vrot.slane %v934, 1
        %v936 = vadd.f32 %v934, %v935
        %v937 = vsel %vm492, %v915, 0.0
        %v938 = vrot.slane %v937, 4
        %v939 = vadd.f32 %v937, %v938
        %v940 = vrot.slane %v939, 2
        %v941 = vadd.f32 %v939, %v940
        %v942 = vrot.slane %v941, 1
        %v943 = vadd.f32 %v941, %v942
        %v944 = vsel %vm492, %v916, 0.0
        %v945 = vrot.slane %v944, 4
        %v946 = vadd.f32 %v944, %v945
        %v947 = vrot.slane %v946, 2
        %v948 = vadd.f32 %v946, %v947
        %v949 = vrot.slane %v948, 1
        %v950 = vadd.f32 %v948, %v949
        %v951 = vsel %vm492, %v917, 0.0
        %v952 = vrot.slane %v951, 4
        %v953 = vadd.f32 %v951, %v952
        %v954 = vrot.slane %v953, 2
        %v955 = vadd.f32 %v953, %v954
        %v956 = vrot.slane %v955, 1
        %v957 = vadd.f32 %v955, %v956
        %v958 = vsel %vm492, %v918, 0.0
        %v959 = vrot.slane %v958, 4
        %v960 = vadd.f32 %v958, %v959
        %v961 = vrot.slane %v960, 2
        %v962 = vadd.f32 %v960, %v961
        %v963 = vrot.slane %v962, 1
        %v964 = vadd.f32 %v962, %v963
        %v965 = vsel %vm492, %v919, 0.0
        %v966 = vrot.slane %v965, 4
        %v967 = vadd.f32 %v965, %v966
        %v968 = vrot.slane %v967, 2
        %v969 = vadd.f32 %v967, %v968
        %v970 = vrot.slane %v969, 1
        %v971 = vadd.f32 %v969, %v970
        %v972 = vsel %vm492, %v920, 0.0
        %v973 = vrot.slane %v972, 4
        %v974 = vadd.f32 %v972, %v973
        %v975 = vrot.slane %v974, 2
        %v976 = vadd.f32 %v974, %v975
        %v977 = vrot.slane %v976, 1
        %v978 = vadd.f32 %v976, %v977
        %v979 = vsel %vm492, %v921, 0.0
        %v980 = vrot.slane %v979, 4
        %v981 = vadd.f32 %v979, %v980
        %v982 = vrot.slane %v981, 2
        %v983 = vadd.f32 %v981, %v982
        %v984 = vrot.slane %v983, 1
        %v985 = vadd.f32 %v983, %v984
        %v986 = vsel %vm492, %v922, 0.0
        %v987 = vrot.slane %v986, 4
        %v988 = vadd.f32 %v986, %v987
        %v989 = vrot.slane %v988, 2
        %v990 = vadd.f32 %v988, %v989
        %v991 = vrot.slane %v990, 1
        %v992 = vadd.f32 %v990, %v991
        %v993 = vsel %vm492, %v923, 0.0
        %v994 = vrot.slane %v993, 4
        %v995 = vadd.f32 %v993, %v994
        %v996 = vrot.slane %v995, 2
        %v997 = vadd.f32 %v995, %v996
        %v998 = vrot.slane %v997, 1
        %v999 = vadd.f32 %v997, %v998
        %v1000 = vsel %vm492, %v924, 0.0
        %v1001 = vrot.slane %v1000, 4
        %v1002 = vadd.f32 %v1000, %v1001
        %v1003 = vrot.slane %v1002, 2
        %v1004 = vadd.f32 %v1002, %v1003
        %v1005 = vrot.slane %v1004, 1
        %v1006 = vadd.f32 %v1004, %v1005
        %v1007 = vsel %vm492, %v925, 0.0
        %v1008 = vrot.slane %v1007, 4
        %v1009 = vadd.f32 %v1007, %v1008
        %v1010 = vrot.slane %v1009, 2
        %v1011 = vadd.f32 %v1009, %v1010
        %v1012 = vrot.slane %v1011, 1
        %v1013 = vadd.f32 %v1011, %v1012
        %v1014 = vsel %vm492, %v926, 0.0
        %v1015 = vrot.slane %v1014, 4
        %v1016 = vadd.f32 %v1014, %v1015
        %v1017 = vrot.slane %v1016, 2
        %v1018 = vadd.f32 %v1016, %v1017
        %v1019 = vrot.slane %v1018, 1
        %v1020 = vadd.f32 %v1018, %v1019
        %v1021 = vsel %vm492, %v927, 0.0
        %v1022 = vrot.slane %v1021, 4
        %v1023 = vadd.f32 %v1021, %v1022
        %v1024 = vrot.slane %v1023, 2
        %v1025 = vadd.f32 %v1023, %v1024
        %v1026 = vrot.slane %v1025, 1
        %v1027 = vadd.f32 %v1025, %v1026
        %v1028 = vsel %vm492, %v928, 0.0
        %v1029 = vrot.slane %v1028, 4
        %v1030 = vadd.f32 %v1028, %v1029
        %v1031 = vrot.slane %v1030, 2
        %v1032 = vadd.f32 %v1030, %v1031
        %v1033 = vrot.slane %v1032, 1
        %v1034 = vadd.f32 %v1032, %v1033
        %v1035 = vsel %vm492, %v929, 0.0
        %v1036 = vrot.slane %v1035, 4
        %v1037 = vadd.f32 %v1035, %v1036
        %v1038 = vrot.slane %v1037, 2
        %v1039 = vadd.f32 %v1037, %v1038
        %v1040 = vrot.slane %v1039, 1
        %v1041 = vadd.f32 %v1039, %v1040
        %v1042 = vld [vmem:[%s6] sm:$0x1]
        %vm1059 = vcmask 1041409
        %v1060 = vsel %vm1059, %v943, %v936
        %vm1061 = vcmask 1042434
        %v1062 = vsel %vm1061, %v950, %v1060
        %vm1063 = vcmask 1043459
        %v1064 = vsel %vm1063, %v957, %v1062
        %vm1065 = vcmask 1044484
        %v1066 = vsel %vm1065, %v964, %v1064
        %vm1067 = vcmask 1045509
        %v1068 = vsel %vm1067, %v971, %v1066
        %vm1069 = vcmask 1046534
        %v1070 = vsel %vm1069, %v978, %v1068
        %vm1071 = vcmask 1047559
        %v1072 = vsel %vm1071, %v985, %v1070
        %v1073 = vsel %vm1059, %v999, %v992
        %v1074 = vsel %vm1061, %v1006, %v1073
        %v1075 = vsel %vm1063, %v1013, %v1074
        %v1076 = vsel %vm1065, %v1020, %v1075
        %v1077 = vsel %vm1067, %v1027, %v1076
        %v1078 = vsel %vm1069, %v1034, %v1077
        %v1079 = vsel %vm1071, %v1041, %v1078
        %v1081 = vsel %vm492, %v1042, 0
        %v1083 = vsel %vm492, %v1072, 0
        %v1085 = vsel %vm492, %v1079, 0
        %1087 = vmatpush.xpose.msra.mxu0 0.0
        %1088 = vmatpush.xpose.msra.mxu0 0.0
        %1089 = vmatpush.xpose.msra.mxu0 0.0
        %1090 = vmatpush.xpose.msra.mxu0 0.0
        %1091 = vmatpush.xpose.msra.mxu0 0.0
        %1092 = vmatpush.xpose.msra.mxu0 0.0
        %1093 = vmatpush.xpose.msra.mxu0 0.0
        %1094 = vmatpush.xpose.msra.mxu0 0.0
        %1095 = vmatpush.xpose.msra.mxu0 0.0
        %1096 = vmatpush.xpose.msra.mxu0 0.0
        %1097 = vmatpush.xpose.msra.mxu0 0.0
        %1098 = vmatpush.xpose.msra.mxu0 0.0
        %1099 = vmatpush.xpose.msra.mxu0 0.0
        %1100 = vmatpush.xpose.msra.mxu0 0.0
        %1101 = vmatpush.xpose.msra.mxu0 %v1085
        %1102 = vmatpush.xpose.msra.mxu0 %v1083
        %1103 = vmatmul.f32.gmra.mxu0 %v1081
        %v1104 = vpop.f32.mrf.mxu0
        %v1105 = vadd.f32 0.0, %v1104
        %1106 = vdwg.mxu0
        %vm1107 = vcmask 122880
        %1108 = vst.msk [vmem:[%s378] sm:$0x1] %vm1107, %v1105
        %s1109 = sand.u32 %s223, 1
        %s1110 = scalar_lea.sflag [#allocation3], %s1109
        %s1111 = sand.u32 %s223, 1
        %s1112 = scalar_lea.vmem [#allocation2], %s1111
        %s1113 = sand.u32 %s249, 1
        %s1114 = scalar_lea.sflag [#allocation5], %s1113
        %s1115 = sand.u32 %s249, 1
        %s1116 = scalar_lea.vmem [#allocation4], %s1115
        // Predicated region
        $region53: #{tpu_custom_call.1} parent=51 // pred_check
          %p1117 = pneg %p233
        $region54: #{tpu_custom_call.1} parent=51 // pred_check_branch
          %1119 = sbr.rel (%p1117) target = $region56
        $region55: #{tpu_custom_call.1} parent=51 // pred_region
          %1121 = vsyncadd %s1110, 0
          %s1122 = scalar_lea.hbm %s8, %s27
          %s1124 = sshll.u32 %s1112, 4
          %s1125 = int_to_ptr.vmem [resolvable:$true] %s1124
          %s1126 = sshll.u32 %s1122, 4
          %s1127 = int_to_ptr.hbm [resolvable:$true] %s1126
          %1129 = dma.vmem_to_hbm [thread:$0]  %s1125, 16, %s1127, %s1110
        $region56: #{tpu_custom_call.1} parent=51 // pred_fallthru
          _
        // Predicated region
        $region57: #{tpu_custom_call.1} parent=51 // pred_check
          %p1130 = pneg %p259
        $region58: #{tpu_custom_call.1} parent=51 // pred_check_branch
          %1132 = sbr.rel (%p1130) target = $region60
        $region59: #{tpu_custom_call.1} parent=51 // pred_region
          %1134 = vsyncadd %s1114, 0
          %s1135 = scalar_lea.hbm %s9, %s27
          %s1137 = sshll.u32 %s1116, 4
          %s1138 = int_to_ptr.vmem [resolvable:$true] %s1137
          %s1139 = sshll.u32 %s1135, 4
          %s1140 = int_to_ptr.hbm [resolvable:$true] %s1139
          %1142 = dma.vmem_to_hbm [thread:$0]  %s1138, 16, %s1140, %s1114
        $region60: #{tpu_custom_call.1} parent=51 // pred_fallthru
          _
      $region52: #{tpu_custom_call.1} parent=5 // pred_fallthru
        _
      %p1143 = scmp.le.s32.totalorder 2, %s22
      // Predicated region
      $region61: #{tpu_custom_call.1} parent=5 // pred_check
        %p1144 = pneg %p1143
      $region62: #{tpu_custom_call.1} parent=5 // pred_check_branch
        %1146 = sbr.rel (%p1144) target = $region64
      $region63: #{tpu_custom_call.1} parent=5 // pred_region
        %s1147 = ssub.s32 %s22, 2
        // Predicated region
        $region65: #{tpu_custom_call.1} parent=63 // pred_check
          %p1148 = pneg %p239
        $region66: #{tpu_custom_call.1} parent=63 // pred_check_branch
          %1150 = sbr.rel (%p1148) target = $region68
        $region67: #{tpu_custom_call.1} parent=63 // pred_region
          %s1151 = sand.u32 %s224, 1
          %s1152 = scalar_lea.sflag [#allocation3], %s1151
          %s1153 = sand.u32 %s224, 1
          %s1154 = scalar_lea.vmem [#allocation2], %s1153
          %1156 = dma.done %s1152, 16
        $region68: #{tpu_custom_call.1} parent=63 // pred_fallthru
          _
        // Predicated region
        $region69: #{tpu_custom_call.1} parent=63 // pred_check
          %p1157 = pneg %p265
        $region70: #{tpu_custom_call.1} parent=63 // pred_check_branch
          %1159 = sbr.rel (%p1157) target = $region72
        $region71: #{tpu_custom_call.1} parent=63 // pred_region
          %s1160 = sand.u32 %s250, 1
          %s1161 = scalar_lea.sflag [#allocation5], %s1160
          %s1162 = sand.u32 %s250, 1
          %s1163 = scalar_lea.vmem [#allocation4], %s1162
          %1165 = dma.done %s1161, 16
        $region72: #{tpu_custom_call.1} parent=63 // pred_fallthru
          _
      $region64: #{tpu_custom_call.1} parent=5 // pred_fallthru
        _
    $region6: #{tpu_custom_call.1} parent=1 // loop_footer
      %s26 = sadd.s32 1, %s22
    $region7: #{tpu_custom_call.1} parent=1 // loop_footer_branch
      %21 = sbr.rel target = $region3
    $region8: #{tpu_custom_call.1} parent=1 // loop_exit
      _
    %1166 = vsyncpa [#allocation3], 1
    %s1167 = scalar_lea.sflag [#allocation3], 1
    %1168 = vsyncpa %s1167, 1
    %1169 = vsyncpa [#allocation5], 1
    %s1170 = scalar_lea.sflag [#allocation5], 1
    %1171 = vsyncpa %s1170, 1

</llo_original>
